<compile_context>
chip_gen: v7x
topology: tpu7x:2x2x1
jax: 0.10.0
libtpu: 0.0.40
codegen_flags: <defaults>
</compile_context>

<pallas_src>
import math

import jax
import jax.numpy as jnp
from jax.experimental import pallas as pl
from jax.experimental.pallas import tpu as pltpu


def _copy_kernel(x_ref, o_ref):
    # default `_forward` of the base CaptionModel: pass-through of the input.
    o_ref[...] = x_ref[...]


def _choose_layout(total):
    """Pick a lane-dense 2D layout (lanes multiple of 128, pad only if needed)."""
    for lanes in (4096, 2048, 1024, 512, 256, 128):
        if total % lanes == 0:
            return lanes, 0
    lanes = 128
    pad = (-total) % lanes
    return lanes, pad


def _choose_tile_rows(rows, lanes, itemsize):
    """Tile rows: ~2 MiB per block (in+out double-buffered stays well under the
    smallest scoped-VMEM default of 16 MiB on v5e). Block's sublane dim is a
    multiple of 8, or equals the full row extent."""
    if rows <= 8:
        return rows
    target = (2 * 1024 * 1024) // max(1, lanes * itemsize)
    target = max(8, min(2048, (target // 8) * 8))
    tr = target
    while tr >= 8:
        if rows % tr == 0:
            return tr
        tr -= 8
    # rows not a multiple of 8: full-extent block is the legal fallback.
    return rows


def _pallas_copy_2d(x2d, tile_rows):
    """Pipelined identity copy of a (rows, lanes) slab through VMEM."""
    rows, lanes = x2d.shape
    return pl.pallas_call(
        _copy_kernel,
        out_shape=jax.ShapeDtypeStruct((rows, lanes), x2d.dtype),
        grid=(pl.cdiv(rows, tile_rows),),
        in_specs=[pl.BlockSpec((tile_rows, lanes), lambda i: (i, 0))],
        out_specs=pl.BlockSpec((tile_rows, lanes), lambda i: (i, 0)),
        compiler_params=pltpu.CompilerParams(
            dimension_semantics=("parallel",)
        ),
    )(x2d)


class CaptionModel:
    """JAX/Pallas port of the PyTorch CaptionModel base class.

    forward(*args, mode='forward', **kwargs) dispatches to self._<mode>.
    The base class has no parameters (its __init__ registers nothing).
    """

    def __init__(self):
        # No parameters in the PyTorch base class.
        pass

    def forward(self, *args, **kwargs):
        mode = kwargs.get("mode", "forward")
        if "mode" in kwargs:
            del kwargs["mode"]
        return getattr(self, "_" + mode)(*args, **kwargs)

    def __call__(self, *args, **kwargs):
        return self.forward(*args, **kwargs)

    # Default mode handler. In the PyTorch codebase subclasses override this;
    # the base class has no compute, so the pass-through is an on-device
    # streaming identity copy in the input's native dtype.
    # TODO(synk): subclasses (e.g. AttModel) define the real _forward compute;
    # the base class itself has no math to translate.
    def _forward(self, x):
        orig_shape = x.shape
        total = int(math.prod(orig_shape)) if orig_shape else 1
        flat = x.reshape(total)

        lanes, pad = _choose_layout(total)
        if pad:
            flat = jnp.pad(flat, (0, pad))
        rows = (total + pad) // lanes
        x2d = flat.reshape(rows, lanes)

        tile_rows = _choose_tile_rows(rows, lanes, x2d.dtype.itemsize)
        y2d = _pallas_copy_2d(x2d, tile_rows)

        y = y2d.reshape(-1)
        if pad:
            y = y[:total]
        return y.reshape(orig_shape)

    # A second mode to demonstrate the dispatch path works for other modes too.
    def _sample(self, x):
        return self._forward(x)


if __name__ == "__main__":
    key = jax.random.PRNGKey(0)
    # Small NCHW input consistent with a caption-model feature map.
    x = jax.random.normal(key, (2, 4, 16, 16), dtype=jnp.float32)

    model = CaptionModel()

    # Default dispatch: mode='forward' -> _forward (identity pass-through).
    y = jax.block_until_ready(model(x, mode="forward"))
    assert y.shape == x.shape and y.dtype == x.dtype
    assert bool(jnp.all(y == x))

    # Exercise another mode through the same dispatcher.
    y2 = jax.block_until_ready(model(x, mode="sample"))
    assert bool(jnp.all(y2 == x))

    # Native-dtype path (no f32 round trip): bf16 stays exact.
    xb = jax.random.normal(key, (2, 4, 16, 16), dtype=jnp.bfloat16)
    yb = jax.block_until_ready(model(xb))
    assert yb.dtype == jnp.bfloat16 and bool(jnp.all(yb == xb))

    print("KERNEL_OK")
</pallas_src>

<mosaic_0001>
module attributes {stable_mosaic.version = 11 : i64} {
  func.func @_copy_kernel(%arg0: i32, %arg1: memref<1x2048xf32, #tpu.memory_space<vmem>>, %arg2: memref<1x2048xf32, #tpu.memory_space<vmem>>) attributes {dimension_semantics = [#tpu.dimension_semantics<parallel>], iteration_bounds = array<i64: 1>, scalar_prefetch = 0 : i64, scratch_operands = 0 : i64, tpu.core_type = #tpu.core_type<tc>, window_params = [{transform_indices = @transform_0, window_bounds = array<i64: 1, 2048>}, {transform_indices = @transform_1, window_bounds = array<i64: 1, 2048>}]} {
    %c0 = arith.constant 0 : index
    %c0_0 = arith.constant 0 : index
    %0 = vector.load %arg1[%c0, %c0_0] : memref<1x2048xf32, #tpu.memory_space<vmem>>, vector<1x2048xf32>
    %c0_1 = arith.constant 0 : index
    %c0_2 = arith.constant 0 : index
    %1 = vector.load %arg2[%c0_1, %c0_2] : memref<1x2048xf32, #tpu.memory_space<vmem>>, vector<1x2048xf32>
    tpu.vector_store %arg2[%c0_1, %c0_2], %0 {strides = array<i32>} : memref<1x2048xf32, #tpu.memory_space<vmem>>, vector<1x2048xf32>,
    return
  }
  func.func @transform_0(%arg0: i32) -> (i32, i32) {
    %c0_i32 = arith.constant 0 : i32
    %c0_i32_0 = arith.constant 0 : i32
    return %arg0, %c0_i32 : i32, i32
  }
  func.func @transform_1(%arg0: i32) -> (i32, i32) {
    %c0_i32 = arith.constant 0 : i32
    %c0_i32_0 = arith.constant 0 : i32
    return %arg0, %c0_i32 : i32, i32
  }
}

</mosaic_0001>

<llo_original>
// kernel: tpu_custom_call.1
$region0: #{tpu_custom_call.1}
  #allocation0 [shape = 'u32[]', space=smem, size = 0x4, offset = 0x4, fixed_abs, tag = 'smem constant byte address 0x4 - core index']
  #allocation1 [shape = 'u32[144,128]{1,0:T(1,128)}', space=vmem, size = 0x12000, scoped, tag = 'internal scratch']
  %s0 = inlined_call_operand.hbm [shape: f32[1,2048], index: 0, kind: input, shape index: {}]
  %s1 = inlined_call_operand.hbm [shape: f32[1,2048], index: 1, kind: output, shape index: {}]
  %s2 = sld [smem:[#allocation0]]
  $region18: #{tpu_custom_call.1} parent=0
    _
  %s4 = ssub.s32 1, %s2
  %s5 = scalar_select 0, %s4, %s2
  $region1: #{tpu_custom_call.1} parent=0
    #allocation2 [shape = 'u8[8192]{0}', space=vmem, size = 0x2000, scoped, tag = 'input window, operand 0, single buffered']
    #allocation3 [shape = 's32[1]{0}', space=sflag, size = 0x4, scoped, tag = 'scoped memory for tpu_custom_call.1']
    #allocation4 [shape = 's32[1]{0}', space=sflag, size = 0x4, scoped, tag = 'scoped memory for tpu_custom_call.1']
    #allocation5 [shape = 'u8[8192]{0}', space=vmem, size = 0x2000, scoped, tag = 'output window, operand 0, single buffered']
    %6 = vsyncpa [#allocation3], 0
    %7 = vsyncpa [#allocation4], 0
    // Predicated region
    $region2: #{tpu_custom_call.1} parent=1 // pred_check
      _
    $region3: #{tpu_custom_call.1} parent=1 // pred_check_branch
      %9 = sbr.rel (0) target = $region5
    $region4: #{tpu_custom_call.1} parent=1 // pred_region
      %s11 = ssub.s32 256, 256
      %12 = vsyncadd [#allocation3], %s11
      %s14 = sshll.u32 [#allocation2], 4
      %s15 = int_to_ptr.vmem [resolvable:$true] %s14
      %17 = dma.hbm_to_vmem [thread:$0]  %s0, 256, %s15, [#allocation3]
    $region5: #{tpu_custom_call.1} parent=1 // pred_fallthru
      _
    // Predicated region
    $region6: #{tpu_custom_call.1} parent=1 // pred_check
      _
    $region7: #{tpu_custom_call.1} parent=1 // pred_check_branch
      %19 = sbr.rel (0) target = $region9
    $region8: #{tpu_custom_call.1} parent=1 // pred_region
      %20 = dma.done [#allocation3], 256
    $region9: #{tpu_custom_call.1} parent=1 // pred_fallthru
      _
    %v21 = vld [vmem:[#allocation2] sm:$0xff]
    %v22 = vld [vmem:[#allocation2 + $0x8] sm:$0xff]
    %23 = vst [vmem:[#allocation5] sm:$0xff] %v21
    %24 = vst [vmem:[#allocation5 + $0x8] sm:$0xff] %v22
    // Predicated region
    $region10: #{tpu_custom_call.1} parent=1 // pred_check
      _
    $region11: #{tpu_custom_call.1} parent=1 // pred_check_branch
      %26 = sbr.rel (0) target = $region13
    $region12: #{tpu_custom_call.1} parent=1 // pred_region
      %s28 = ssub.s32 256, 256
      %29 = vsyncadd [#allocation4], %s28
      %s31 = sshll.u32 [#allocation5], 4
      %s32 = int_to_ptr.vmem [resolvable:$true] %s31
      %34 = dma.vmem_to_hbm [thread:$0]  %s32, 256, %s1, [#allocation4]
    $region13: #{tpu_custom_call.1} parent=1 // pred_fallthru
      _
    // Predicated region
    $region14: #{tpu_custom_call.1} parent=1 // pred_check
      _
    $region15: #{tpu_custom_call.1} parent=1 // pred_check_branch
      %36 = sbr.rel (0) target = $region17
    $region16: #{tpu_custom_call.1} parent=1 // pred_region
      %37 = dma.done [#allocation4], 256
    $region17: #{tpu_custom_call.1} parent=1 // pred_fallthru
      _
    %38 = vsyncpa [#allocation3], 1
    %39 = vsyncpa [#allocation4], 1

</llo_original>
